<compile_context>
chip_gen: v6e
topology: v6e:2x2x1
jax: 0.10.0
libtpu: 0.0.40
codegen_flags: <defaults>
</compile_context>

<pallas_src>
import functools
import math

import jax
import jax.numpy as jnp
from jax.experimental import pallas as pl
from jax.experimental.pallas import tpu as pltpu

_LANE = 128           # TPU lane width; outputs / projections padded to this
_NEG_INF = -1e30


def _round_up(x, m):
    return ((x + m - 1) // m) * m


# ---------------------------------------------------------------------------
# Shared attention / gate / norm core (traced inside the kernels)
# ---------------------------------------------------------------------------
def _attention_core(q, k, v, x_r, adj, wb, gamma, lnb, *, heads, out_ch,
                    concat, apply_norm_relu, mxu_dtype, d_pad):
    """q/x_r: [TN, ...] tile rows;  k/v: [N, ...];  adj: [TN, N]."""
    f32 = jnp.float32
    H, C = heads, out_ch
    D = H * C if concat else C
    inv_sqrt_c = 1.0 / math.sqrt(C)

    # ---- per-head masked attention (softmax over incoming edges) ----------
    head_outs = []
    for h in range(H):
        qh = q[:, h * C:(h + 1) * C].astype(mxu_dtype)
        kh = k[:, h * C:(h + 1) * C].astype(mxu_dtype)
        vh = v[:, h * C:(h + 1) * C].astype(mxu_dtype)
        scores = jax.lax.dot_general(
            qh, kh, (((1,), (1,)), ((), ())),
            preferred_element_type=f32) * inv_sqrt_c            # [TN, N]
        masked = jnp.where(adj > 0.0, scores, _NEG_INF)
        m = jnp.max(masked, axis=-1, keepdims=True)
        p = jnp.exp(masked - m) * adj
        denom = jnp.sum(p, axis=-1, keepdims=True)
        # nodes without incoming edges aggregate to zero (PyG semantics)
        inv = pl.reciprocal(jnp.where(denom > 0.0, denom, 1.0), approx=True)
        alpha = p * inv
        head_outs.append(
            jnp.dot(alpha.astype(mxu_dtype), vh,
                    preferred_element_type=f32))                # [TN, C]

    if concat:
        att = jnp.concatenate(head_outs, axis=-1)               # [TN, H*C]
    else:
        att = head_outs[0]
        for ho in head_outs[1:]:
            att = att + ho
        att = att * (1.0 / H)                                   # head mean

    # ---- beta-gated skip connection (TransformerConv beta=True) -----------
    diff = att - x_r
    logit = jnp.sum(
        att * wb[:, :D] + x_r * wb[:, D:2 * D] + diff * wb[:, 2 * D:3 * D],
        axis=-1, keepdims=True)                                 # [TN, 1]
    gate = 1.0 / (1.0 + jnp.exp(-logit))
    out = gate * x_r + (1.0 - gate) * att

    # ---- LayerNorm + ReLU epilogue (all layers except the last) -----------
    if apply_norm_relu:
        mu = jnp.mean(out, axis=-1, keepdims=True)
        var = jnp.mean(jnp.square(out - mu), axis=-1, keepdims=True)
        out = (out - mu) * jax.lax.rsqrt(var + 1e-5)
        out = out * gamma + lnb
        out = jnp.maximum(out, 0.0)

    # ---- lane-dense padded result ------------------------------------------
    tn = out.shape[0]
    pad = d_pad - D
    if pad > 0:
        out = jnp.concatenate([out, jnp.zeros((tn, pad), f32)], axis=-1)
    return out


# ---------------------------------------------------------------------------
# Kernels
# ---------------------------------------------------------------------------
def _fused_layer_kernel(x_ref, adj_ref, wall_ref, ball_ref, wbeta_ref,
                        gamma_ref, lnb_ref, o_ref, *, heads, out_ch, concat,
                        apply_norm_relu, mxu_dtype):
    """Whole layer in one tile: fused [Q|K|V|skip] projection + attention."""
    H, C = heads, out_ch
    HC = H * C
    D = HC if concat else C
    proj = jnp.dot(x_ref[...], wall_ref[...],
                   preferred_element_type=jnp.float32) + ball_ref[...]
    out = _attention_core(
        proj[:, :HC], proj[:, HC:2 * HC], proj[:, 2 * HC:3 * HC],
        proj[:, 3 * HC:3 * HC + D], adj_ref[...], wbeta_ref[...],
        gamma_ref[...], lnb_ref[...],
        heads=H, out_ch=C, concat=concat, apply_norm_relu=apply_norm_relu,
        mxu_dtype=mxu_dtype, d_pad=o_ref.shape[1])
    o_ref[...] = out.astype(o_ref.dtype)


def _projection_kernel(x_ref, wall_ref, ball_ref, o_ref):
    """proj = x @ [Q|K|V|skip] + b  — computed once per node (row-parallel)."""
    o_ref[...] = (jnp.dot(x_ref[...], wall_ref[...],
                          preferred_element_type=jnp.float32)
                  + ball_ref[...]).astype(o_ref.dtype)


def _attention_kernel(ptile_ref, pfull_ref, adj_ref, wbeta_ref, gamma_ref,
                      lnb_ref, o_ref, *, heads, out_ch, concat,
                      apply_norm_relu, mxu_dtype):
    """Row-tiled attention; K/V source (full proj) is VMEM-resident."""
    H, C = heads, out_ch
    HC = H * C
    D = HC if concat else C
    ptile = ptile_ref[...]
    pfull = pfull_ref[...]
    out = _attention_core(
        ptile[:, :HC], pfull[:, HC:2 * HC], pfull[:, 2 * HC:3 * HC],
        ptile[:, 3 * HC:3 * HC + D], adj_ref[...], wbeta_ref[...],
        gamma_ref[...], lnb_ref[...],
        heads=H, out_ch=C, concat=concat, apply_norm_relu=apply_norm_relu,
        mxu_dtype=mxu_dtype, d_pad=o_ref.shape[1])
    o_ref[...] = out.astype(o_ref.dtype)


# ---------------------------------------------------------------------------
# Per-layer wrapper
# ---------------------------------------------------------------------------
def transformer_conv_layer(x, adj, params, *, heads, out_ch, concat,
                           apply_norm_relu, row_tile=128,
                           mxu_dtype=jnp.float32):
    """One TransformerConv layer (optionally fused with LayerNorm + ReLU)."""
    N, f_in = x.shape
    H, C = heads, out_ch
    HC = H * C
    D = HC if concat else C
    assert D <= _LANE, "feature width above one lane slab not needed here"
    assert row_tile % 8 == 0

    p_cols = 3 * HC + D
    p_pad = _round_up(p_cols, _LANE)
    d_pad = _LANE

    # Fused projection weights [Q | K | V | skip], zero-padded to lane width.
    w_all = jnp.concatenate(
        [params["wq"], params["wk"], params["wv"], params["wskip"]], axis=1)
    b_all = jnp.concatenate(
        [params["bq"], params["bk"], params["bv"], params["bskip"]])
    if p_pad > p_cols:
        w_all = jnp.pad(w_all, ((0, 0), (0, p_pad - p_cols)))
        b_all = jnp.pad(b_all, (0, p_pad - p_cols))
    b_all = b_all[None, :].astype(jnp.float32)
    w_beta = params["wbeta"][None, :]                      # [1, 3D]
    gamma = params.get("gamma", jnp.ones((D,), jnp.float32))[None, :]
    lnb = params.get("lnb", jnp.zeros((D,), jnp.float32))[None, :]

    # Only MXU operands get the (optionally bf16) matmul dtype.
    x_m = x.astype(mxu_dtype)
    w_all_m = w_all.astype(mxu_dtype)

    # Row-tile selection.  NOTE(tile budget): for large graphs pick the
    # biggest TN such that 2 (double-buffer) * TN*N*4B (adj rows) + resident
    # proj/weights + (TN, 128) output buffers fit the scoped VMEM budget.
    if N <= row_tile or N % row_tile != 0:
        tn = N
    else:
        tn = row_tile

    parallel = pltpu.CompilerParams(dimension_semantics=("parallel",))
    kern_kwargs = dict(heads=H, out_ch=C, concat=concat,
                       apply_norm_relu=apply_norm_relu, mxu_dtype=mxu_dtype)

    if tn == N:
        # -------- single-tile fast path: fully fused layer ------------------
        flops = int(2 * N * f_in * p_pad + 4 * H * N * N * C + 12 * N * D)
        trans = int(H * N * N + 2 * N)
        bytes_accessed = int(4 * (N * f_in + N * N + f_in * p_pad + p_pad
                                  + 5 * D + N * d_pad))
        out_padded = pl.pallas_call(
            functools.partial(_fused_layer_kernel, **kern_kwargs),
            out_shape=jax.ShapeDtypeStruct((N, d_pad), jnp.float32),
            grid=(1,),
            in_specs=[
                pl.BlockSpec((N, f_in), lambda i: (0, 0)),     # x
                pl.BlockSpec((N, N), lambda i: (0, 0)),        # adjacency
                pl.BlockSpec((f_in, p_pad), lambda i: (0, 0)),  # fused weights
                pl.BlockSpec((1, p_pad), lambda i: (0, 0)),
                pl.BlockSpec((1, 3 * D), lambda i: (0, 0)),
                pl.BlockSpec((1, D), lambda i: (0, 0)),
                pl.BlockSpec((1, D), lambda i: (0, 0)),
            ],
            out_specs=pl.BlockSpec((N, d_pad), lambda i: (0, 0)),
            compiler_params=parallel,
            cost_estimate=pl.CostEstimate(flops=flops, transcendentals=trans,
                                          bytes_accessed=bytes_accessed),
        )(x_m, adj, w_all_m, b_all, w_beta, gamma, lnb)
        return out_padded[:, :D]

    # -------- multi-tile path: projection once, then row-tiled attention ----
    grid = (N // tn,)

    proj = pl.pallas_call(
        _projection_kernel,
        out_shape=jax.ShapeDtypeStruct((N, p_pad), jnp.float32),
        grid=grid,
        in_specs=[
            pl.BlockSpec((tn, f_in), lambda i: (i, 0)),        # x rows
            pl.BlockSpec((f_in, p_pad), lambda i: (0, 0)),     # resident W
            pl.BlockSpec((1, p_pad), lambda i: (0, 0)),
        ],
        out_specs=pl.BlockSpec((tn, p_pad), lambda i: (i, 0)),
        compiler_params=parallel,
        cost_estimate=pl.CostEstimate(
            flops=int(2 * N * f_in * p_pad), transcendentals=0,
            bytes_accessed=int(4 * (N * f_in + f_in * p_pad + p_pad
                                    + N * p_pad))),
    )(x_m, w_all_m, b_all)

    out_padded = pl.pallas_call(
        functools.partial(_attention_kernel, **kern_kwargs),
        out_shape=jax.ShapeDtypeStruct((N, d_pad), jnp.float32),
        grid=grid,
        in_specs=[
            pl.BlockSpec((tn, p_pad), lambda i: (i, 0)),   # tile rows (q/skip)
            pl.BlockSpec((N, p_pad), lambda i: (0, 0)),    # full proj (k/v)
            pl.BlockSpec((tn, N), lambda i: (i, 0)),       # adjacency rows
            pl.BlockSpec((1, 3 * D), lambda i: (0, 0)),
            pl.BlockSpec((1, D), lambda i: (0, 0)),
            pl.BlockSpec((1, D), lambda i: (0, 0)),
        ],
        out_specs=pl.BlockSpec((tn, d_pad), lambda i: (i, 0)),
        compiler_params=parallel,
        cost_estimate=pl.CostEstimate(
            flops=int(4 * H * N * N * C + 12 * N * D),
            transcendentals=int(H * N * N + 2 * N),
            bytes_accessed=int(4 * (2 * N * p_pad + N * N + 5 * D
                                    + N * d_pad))),
    )(proj, proj, adj, w_beta, gamma, lnb)

    return out_padded[:, :D]


# ---------------------------------------------------------------------------
# Full model wrapper
# ---------------------------------------------------------------------------
def edges_to_dense_mask(edge_index, num_nodes):
    """adj[i, j] = 1 iff edge j -> i (edge_index rows: [source, target])."""
    src, dst = edge_index[0], edge_index[1]
    adj = jnp.zeros((num_nodes, num_nodes), jnp.float32)
    return adj.at[dst, src].set(1.0)


def graph_transformer_forward(x, edge_index, layer_params, *, heads,
                              mxu_dtype=jnp.float32, row_tile=128):
    """GraphTransformer.forward(x, edge_index) — inference (dropout no-op)."""
    adj = edges_to_dense_mask(edge_index, x.shape[0])
    n_layers = len(layer_params)
    h = x
    for li, lp in enumerate(layer_params):
        last = (li == n_layers - 1)
        h = transformer_conv_layer(
            h, adj, lp, heads=heads, out_ch=lp["out_ch"], concat=not last,
            apply_norm_relu=not last, row_tile=row_tile, mxu_dtype=mxu_dtype)
    return h


# ---------------------------------------------------------------------------
# Pure-JAX reference (mirrors PyG TransformerConv / GraphTransformer)
# ---------------------------------------------------------------------------
def _transformer_conv_ref(x, adj, p, *, heads, out_ch, concat):
    N = x.shape[0]
    H, C = heads, out_ch
    q = (x @ p["wq"] + p["bq"]).reshape(N, H, C)
    k = (x @ p["wk"] + p["bk"]).reshape(N, H, C)
    v = (x @ p["wv"] + p["bv"]).reshape(N, H, C)
    scores = jnp.einsum("ihc,jhc->hij", q, k) / math.sqrt(C)
    masked = jnp.where(adj[None] > 0, scores, _NEG_INF)
    m = masked.max(axis=-1, keepdims=True)
    e = jnp.exp(masked - m) * adj[None]
    s = e.sum(axis=-1, keepdims=True)
    alpha = e / jnp.where(s > 0, s, 1.0)
    out = jnp.einsum("hij,jhc->ihc", alpha, v)
    out = out.reshape(N, H * C) if concat else out.mean(axis=1)
    x_r = x @ p["wskip"] + p["bskip"]
    gate_in = jnp.concatenate([out, x_r, out - x_r], axis=-1)
    beta = jax.nn.sigmoid(gate_in @ p["wbeta"][:, None])
    return beta * x_r + (1.0 - beta) * out


def graph_transformer_ref(x, edge_index, layer_params, *, heads):
    adj = edges_to_dense_mask(edge_index, x.shape[0])
    n_layers = len(layer_params)
    h = x
    for li, lp in enumerate(layer_params):
        last = (li == n_layers - 1)
        h = _transformer_conv_ref(h, adj, lp, heads=heads,
                                  out_ch=lp["out_ch"], concat=not last)
        if not last:
            mu = h.mean(axis=-1, keepdims=True)
            var = ((h - mu) ** 2).mean(axis=-1, keepdims=True)
            h = (h - mu) / jnp.sqrt(var + 1e-5) * lp["gamma"] + lp["lnb"]
            h = jnp.maximum(h, 0.0)
    return h


# ---------------------------------------------------------------------------
# Parameter construction (weights stored [in, out]: forward is x @ W + b)
# ---------------------------------------------------------------------------
def init_transformer_conv_params(key, f_in, out_ch, heads, concat, with_norm):
    H, C = heads, out_ch
    HC = H * C
    D = HC if concat else C
    ks = jax.random.split(key, 10)
    s_in = 1.0 / math.sqrt(f_in)
    p = dict(
        out_ch=out_ch,
        wq=jax.random.normal(ks[0], (f_in, HC), jnp.float32) * s_in,
        bq=jax.random.normal(ks[1], (HC,), jnp.float32) * 0.1,
        wk=jax.random.normal(ks[2], (f_in, HC), jnp.float32) * s_in,
        bk=jax.random.normal(ks[3], (HC,), jnp.float32) * 0.1,
        wv=jax.random.normal(ks[4], (f_in, HC), jnp.float32) * s_in,
        bv=jax.random.normal(ks[5], (HC,), jnp.float32) * 0.1,
        wskip=jax.random.normal(ks[6], (f_in, D), jnp.float32) * s_in,
        bskip=jax.random.normal(ks[7], (D,), jnp.float32) * 0.1,
        wbeta=jax.random.normal(ks[8], (3 * D,), jnp.float32)
        * (1.0 / math.sqrt(3 * D)),
    )
    if with_norm:
        p["gamma"] = 1.0 + 0.1 * jax.random.normal(ks[9], (D,), jnp.float32)
        p["lnb"] = 0.1 * jax.random.normal(jax.random.fold_in(key, 7),
                                           (D,), jnp.float32)
    return p


if __name__ == "__main__":
    # GraphTransformer(input=16, hidden=32, output=8, layers=2, heads=2)
    N_NODES, F_IN, HIDDEN, OUTPUT, LAYERS, HEADS = 16, 16, 32, 8, 2, 2

    key = jax.random.PRNGKey(0)
    kx, ke, kp, kx2, ke2 = jax.random.split(key, 5)

    x = jax.random.normal(kx, (N_NODES, F_IN), jnp.float32)

    # Deterministic edge_index [2, E]: bidirectional ring + 12 random edges.
    src = list(range(N_NODES)) + [(i + 1) % N_NODES for i in range(N_NODES)]
    dst = [(i + 1) % N_NODES for i in range(N_NODES)] + list(range(N_NODES))
    extra = jax.random.randint(ke, (2, 12), 0, N_NODES).astype(jnp.int32)
    edge_index = jnp.concatenate(
        [jnp.array([src, dst], dtype=jnp.int32), extra], axis=1)

    # Per-layer params (layer 1: hidden//heads per head, concat; last: output).
    layer_keys = jax.random.split(kp, LAYERS)
    layer_params = []
    for li in range(LAYERS):
        last = li == LAYERS - 1
        f_in = F_IN if li == 0 else HIDDEN
        out_ch = OUTPUT if last else HIDDEN // HEADS
        layer_params.append(init_transformer_conv_params(
            layer_keys[li], f_in, out_ch, HEADS,
            concat=not last, with_norm=not last))

    # TODO(synk): attention dropout (p=0.3) is a training-time op; this kernel
    # implements the inference forward where it is a no-op.

    # Accurate f32 reference.
    with jax.default_matmul_precision("float32"):
        ref = jax.block_until_ready(
            graph_transformer_ref(x, edge_index, layer_params, heads=HEADS))

    # Fully fused single-tile path, f32 MXU operands.
    out_f32 = jax.block_until_ready(
        graph_transformer_forward(x, edge_index, layer_params, heads=HEADS,
                                  mxu_dtype=jnp.float32))
    assert out_f32.shape == (N_NODES, OUTPUT)
    err_f32 = float(jnp.max(jnp.abs(out_f32 - ref)))
    assert jnp.allclose(out_f32, ref, atol=3e-2, rtol=3e-2), err_f32

    # bf16 MXU-operand path (f32 accumulate).
    out_bf16 = jax.block_until_ready(
        graph_transformer_forward(x, edge_index, layer_params, heads=HEADS,
                                  mxu_dtype=jnp.bfloat16))
    assert out_bf16.shape == (N_NODES, OUTPUT)
    err_bf16 = float(jnp.max(jnp.abs(out_bf16 - ref)))
    assert jnp.allclose(out_bf16, ref, atol=0.25, rtol=0.25), err_bf16

    # Multi-tile path (projection kernel + row-tiled attention kernel).
    N2 = 32
    x2 = jax.random.normal(kx2, (N2, F_IN), jnp.float32)
    src2 = list(range(N2)) + [(i + 1) % N2 for i in range(N2)]
    dst2 = [(i + 1) % N2 for i in range(N2)] + list(range(N2))
    extra2 = jax.random.randint(ke2, (2, 20), 0, N2).astype(jnp.int32)
    edge_index2 = jnp.concatenate(
        [jnp.array([src2, dst2], dtype=jnp.int32), extra2], axis=1)

    with jax.default_matmul_precision("float32"):
        ref2 = jax.block_until_ready(
            graph_transformer_ref(x2, edge_index2, layer_params, heads=HEADS))
    out2 = jax.block_until_ready(
        graph_transformer_forward(x2, edge_index2, layer_params, heads=HEADS,
                                  mxu_dtype=jnp.float32, row_tile=8))
    assert out2.shape == (N2, OUTPUT)
    err2 = float(jnp.max(jnp.abs(out2 - ref2)))
    assert jnp.allclose(out2, ref2, atol=3e-2, rtol=3e-2), err2

    print("KERNEL_OK")
</pallas_src>

<mosaic_0001>
module attributes {stable_mosaic.version = 11 : i64} {
  func.func @_fused_layer_kernel(%arg0: i32, %arg1: memref<16x16xf32, #tpu.memory_space<vmem>>, %arg2: memref<16x16xf32, #tpu.memory_space<vmem>>, %arg3: memref<16x128xf32, #tpu.memory_space<vmem>>, %arg4: memref<1x128xf32, #tpu.memory_space<vmem>>, %arg5: memref<1x96xf32, #tpu.memory_space<vmem>>, %arg6: memref<1x32xf32, #tpu.memory_space<vmem>>, %arg7: memref<1x32xf32, #tpu.memory_space<vmem>>, %arg8: memref<16x128xf32, #tpu.memory_space<vmem>>) attributes {dimension_semantics = [#tpu.dimension_semantics<parallel>], iteration_bounds = array<i64: 1>, scalar_prefetch = 0 : i64, scratch_operands = 0 : i64, tpu.core_type = #tpu.core_type<tc>, window_params = [{pipeline_mode = #tpu.pipeline_mode<synchronous>, transform_indices = @transform_0, window_bounds = array<i64: 16, 16>}, {pipeline_mode = #tpu.pipeline_mode<synchronous>, transform_indices = @transform_1, window_bounds = array<i64: 16, 16>}, {pipeline_mode = #tpu.pipeline_mode<synchronous>, transform_indices = @transform_2, window_bounds = array<i64: 16, 128>}, {pipeline_mode = #tpu.pipeline_mode<synchronous>, transform_indices = @transform_3, window_bounds = array<i64: 1, 128>}, {pipeline_mode = #tpu.pipeline_mode<synchronous>, transform_indices = @transform_4, window_bounds = array<i64: 1, 96>}, {pipeline_mode = #tpu.pipeline_mode<synchronous>, transform_indices = @transform_5, window_bounds = array<i64: 1, 32>}, {pipeline_mode = #tpu.pipeline_mode<synchronous>, transform_indices = @transform_6, window_bounds = array<i64: 1, 32>}, {pipeline_mode = #tpu.pipeline_mode<synchronous>, transform_indices = @transform_7, window_bounds = array<i64: 16, 128>}]} {
    %c0 = arith.constant 0 : index
    %c0_0 = arith.constant 0 : index
    %0 = vector.load %arg1[%c0, %c0_0] : memref<16x16xf32, #tpu.memory_space<vmem>>, vector<16x16xf32>
    %c0_1 = arith.constant 0 : index
    %c0_2 = arith.constant 0 : index
    %1 = vector.load %arg3[%c0_1, %c0_2] : memref<16x128xf32, #tpu.memory_space<vmem>>, vector<16x128xf32>
    %cst = arith.constant dense<0.000000e+00> : vector<16x128xf32>
    %2 = tpu.matmul %0, %1, %cst {dimension_numbers = #tpu.dot_dimension_numbers<[1], [0], [0], [1], [0, 0, 1, 1], [], []>} : vector<16x16xf32>, vector<16x128xf32>, vector<16x128xf32> -> vector<16x128xf32>
    %c0_3 = arith.constant 0 : index
    %c0_4 = arith.constant 0 : index
    %3 = vector.load %arg4[%c0_3, %c0_4] : memref<1x128xf32, #tpu.memory_space<vmem>>, vector<1x128xf32>
    %4 = vector.broadcast %3 : vector<1x128xf32> to vector<16x128xf32>
    %5 = arith.addf %2, %4 : vector<16x128xf32>
    %6 = vector.extract_strided_slice %5 {offsets = [0, 0], sizes = [16, 32], strides = [1, 1]} : vector<16x128xf32> to vector<16x32xf32>
    %7 = vector.extract_strided_slice %5 {offsets = [0, 32], sizes = [16, 32], strides = [1, 1]} : vector<16x128xf32> to vector<16x32xf32>
    %8 = vector.extract_strided_slice %5 {offsets = [0, 64], sizes = [16, 32], strides = [1, 1]} : vector<16x128xf32> to vector<16x32xf32>
    %9 = vector.extract_strided_slice %5 {offsets = [0, 96], sizes = [16, 32], strides = [1, 1]} : vector<16x128xf32> to vector<16x32xf32>
    %c0_5 = arith.constant 0 : index
    %c0_6 = arith.constant 0 : index
    %10 = vector.load %arg2[%c0_5, %c0_6] : memref<16x16xf32, #tpu.memory_space<vmem>>, vector<16x16xf32>
    %c0_7 = arith.constant 0 : index
    %c0_8 = arith.constant 0 : index
    %11 = vector.load %arg5[%c0_7, %c0_8] : memref<1x96xf32, #tpu.memory_space<vmem>>, vector<1x96xf32>
    %c0_9 = arith.constant 0 : index
    %c0_10 = arith.constant 0 : index
    %12 = vector.load %arg6[%c0_9, %c0_10] : memref<1x32xf32, #tpu.memory_space<vmem>>, vector<1x32xf32>
    %c0_11 = arith.constant 0 : index
    %c0_12 = arith.constant 0 : index
    %13 = vector.load %arg7[%c0_11, %c0_12] : memref<1x32xf32, #tpu.memory_space<vmem>>, vector<1x32xf32>
    %14 = vector.extract_strided_slice %6 {offsets = [0, 0], sizes = [16, 16], strides = [1, 1]} : vector<16x32xf32> to vector<16x16xf32>
    %15 = vector.extract_strided_slice %7 {offsets = [0, 0], sizes = [16, 16], strides = [1, 1]} : vector<16x32xf32> to vector<16x16xf32>
    %16 = vector.extract_strided_slice %8 {offsets = [0, 0], sizes = [16, 16], strides = [1, 1]} : vector<16x32xf32> to vector<16x16xf32>
    %cst_13 = arith.constant dense<0.000000e+00> : vector<16x16xf32>
    %17 = tpu.matmul %14, %15, %cst_13 {dimension_numbers = #tpu.dot_dimension_numbers<[1], [1], [0], [0], [0, 0, 1, 0], [], []>} : vector<16x16xf32>, vector<16x16xf32>, vector<16x16xf32> -> vector<16x16xf32>
    %cst_14 = arith.constant 2.500000e-01 : f32
    %18 = vector.broadcast %cst_14 : f32 to vector<16x16xf32>
    %19 = arith.mulf %17, %18 : vector<16x16xf32>
    %cst_15 = arith.constant 0.000000e+00 : f32
    %20 = vector.broadcast %cst_15 : f32 to vector<16x16xf32>
    %21 = arith.cmpf ogt, %10, %20 : vector<16x16xf32>
    %cst_16 = arith.constant -1.000000e+30 : f32
    %22 = vector.broadcast %cst_16 : f32 to vector<16x16xf32>
    %23 = arith.select %21, %19, %22 : vector<16x16xi1>, vector<16x16xf32>
    %cst_17 = arith.constant dense<0xFF800000> : vector<16xf32>
    %24 = vector.multi_reduction <maximumf>, %23, %cst_17 [1] : vector<16x16xf32> to vector<16xf32>
    %25 = vector.shape_cast %24 : vector<16xf32> to vector<16x1xf32>
    %26 = vector.broadcast %25 : vector<16x1xf32> to vector<16x16xf32>
    %27 = arith.subf %23, %26 : vector<16x16xf32>
    %28 = math.exp %27 : vector<16x16xf32>
    %29 = arith.mulf %28, %10 : vector<16x16xf32>
    %cst_18 = arith.constant dense<0.000000e+00> : vector<16xf32>
    %30 = vector.multi_reduction <add>, %29, %cst_18 [1] : vector<16x16xf32> to vector<16xf32>
    %31 = vector.shape_cast %30 : vector<16xf32> to vector<16x1xf32>
    %cst_19 = arith.constant 0.000000e+00 : f32
    %32 = vector.broadcast %cst_19 : f32 to vector<16x1xf32>
    %33 = arith.cmpf ogt, %31, %32 : vector<16x1xf32>
    %cst_20 = arith.constant 1.000000e+00 : f32
    %34 = vector.broadcast %cst_20 : f32 to vector<16x1xf32>
    %35 = arith.select %33, %31, %34 : vector<16x1xi1>, vector<16x1xf32>
    %36 = tpu.reciprocal %35 {approx = true} : vector<16x1xf32> -> vector<16x1xf32>
    %37 = vector.broadcast %36 : vector<16x1xf32> to vector<16x16xf32>
    %38 = arith.mulf %29, %37 : vector<16x16xf32>
    %cst_21 = arith.constant dense<0.000000e+00> : vector<16x16xf32>
    %39 = tpu.matmul %38, %16, %cst_21 {dimension_numbers = #tpu.dot_dimension_numbers<[1], [0], [0], [1], [0, 0, 1, 1], [], []>} : vector<16x16xf32>, vector<16x16xf32>, vector<16x16xf32> -> vector<16x16xf32>
    %40 = vector.extract_strided_slice %6 {offsets = [0, 16], sizes = [16, 16], strides = [1, 1]} : vector<16x32xf32> to vector<16x16xf32>
    %41 = vector.extract_strided_slice %7 {offsets = [0, 16], sizes = [16, 16], strides = [1, 1]} : vector<16x32xf32> to vector<16x16xf32>
    %42 = vector.extract_strided_slice %8 {offsets = [0, 16], sizes = [16, 16], strides = [1, 1]} : vector<16x32xf32> to vector<16x16xf32>
    %cst_22 = arith.constant dense<0.000000e+00> : vector<16x16xf32>
    %43 = tpu.matmul %40, %41, %cst_22 {dimension_numbers = #tpu.dot_dimension_numbers<[1], [1], [0], [0], [0, 0, 1, 0], [], []>} : vector<16x16xf32>, vector<16x16xf32>, vector<16x16xf32> -> vector<16x16xf32>
    %cst_23 = arith.constant 2.500000e-01 : f32
    %44 = vector.broadcast %cst_23 : f32 to vector<16x16xf32>
    %45 = arith.mulf %43, %44 : vector<16x16xf32>
    %cst_24 = arith.constant 0.000000e+00 : f32
    %46 = vector.broadcast %cst_24 : f32 to vector<16x16xf32>
    %47 = arith.cmpf ogt, %10, %46 : vector<16x16xf32>
    %cst_25 = arith.constant -1.000000e+30 : f32
    %48 = vector.broadcast %cst_25 : f32 to vector<16x16xf32>
    %49 = arith.select %47, %45, %48 : vector<16x16xi1>, vector<16x16xf32>
    %cst_26 = arith.constant dense<0xFF800000> : vector<16xf32>
    %50 = vector.multi_reduction <maximumf>, %49, %cst_26 [1] : vector<16x16xf32> to vector<16xf32>
    %51 = vector.shape_cast %50 : vector<16xf32> to vector<16x1xf32>
    %52 = vector.broadcast %51 : vector<16x1xf32> to vector<16x16xf32>
    %53 = arith.subf %49, %52 : vector<16x16xf32>
    %54 = math.exp %53 : vector<16x16xf32>
    %55 = arith.mulf %54, %10 : vector<16x16xf32>
    %cst_27 = arith.constant dense<0.000000e+00> : vector<16xf32>
    %56 = vector.multi_reduction <add>, %55, %cst_27 [1] : vector<16x16xf32> to vector<16xf32>
    %57 = vector.shape_cast %56 : vector<16xf32> to vector<16x1xf32>
    %cst_28 = arith.constant 0.000000e+00 : f32
    %58 = vector.broadcast %cst_28 : f32 to vector<16x1xf32>
    %59 = arith.cmpf ogt, %57, %58 : vector<16x1xf32>
    %cst_29 = arith.constant 1.000000e+00 : f32
    %60 = vector.broadcast %cst_29 : f32 to vector<16x1xf32>
    %61 = arith.select %59, %57, %60 : vector<16x1xi1>, vector<16x1xf32>
    %62 = tpu.reciprocal %61 {approx = true} : vector<16x1xf32> -> vector<16x1xf32>
    %63 = vector.broadcast %62 : vector<16x1xf32> to vector<16x16xf32>
    %64 = arith.mulf %55, %63 : vector<16x16xf32>
    %cst_30 = arith.constant dense<0.000000e+00> : vector<16x16xf32>
    %65 = tpu.matmul %64, %42, %cst_30 {dimension_numbers = #tpu.dot_dimension_numbers<[1], [0], [0], [1], [0, 0, 1, 1], [], []>} : vector<16x16xf32>, vector<16x16xf32>, vector<16x16xf32> -> vector<16x16xf32>
    %66 = tpu.concatenate %39, %65 in 1 : vector<16x16xf32>, vector<16x16xf32> -> vector<16x32xf32>
    %67 = arith.subf %66, %9 : vector<16x32xf32>
    %68 = vector.extract_strided_slice %11 {offsets = [0, 0], sizes = [1, 32], strides = [1, 1]} : vector<1x96xf32> to vector<1x32xf32>
    %69 = vector.broadcast %68 : vector<1x32xf32> to vector<16x32xf32>
    %70 = arith.mulf %66, %69 : vector<16x32xf32>
    %71 = vector.extract_strided_slice %11 {offsets = [0, 32], sizes = [1, 32], strides = [1, 1]} : vector<1x96xf32> to vector<1x32xf32>
    %72 = vector.broadcast %71 : vector<1x32xf32> to vector<16x32xf32>
    %73 = arith.mulf %9, %72 : vector<16x32xf32>
    %74 = arith.addf %70, %73 : vector<16x32xf32>
    %75 = vector.extract_strided_slice %11 {offsets = [0, 64], sizes = [1, 32], strides = [1, 1]} : vector<1x96xf32> to vector<1x32xf32>
    %76 = vector.broadcast %75 : vector<1x32xf32> to vector<16x32xf32>
    %77 = arith.mulf %67, %76 : vector<16x32xf32>
    %78 = arith.addf %74, %77 : vector<16x32xf32>
    %cst_31 = arith.constant dense<0.000000e+00> : vector<16xf32>
    %79 = vector.multi_reduction <add>, %78, %cst_31 [1] : vector<16x32xf32> to vector<16xf32>
    %80 = vector.shape_cast %79 : vector<16xf32> to vector<16x1xf32>
    %cst_32 = arith.constant 0.000000e+00 : f32
    %81 = vector.broadcast %cst_32 : f32 to vector<16x1xf32>
    %82 = arith.subf %81, %80 : vector<16x1xf32>
    %83 = math.exp %82 : vector<16x1xf32>
    %cst_33 = arith.constant 1.000000e+00 : f32
    %84 = vector.broadcast %cst_33 : f32 to vector<16x1xf32>
    %85 = arith.addf %84, %83 : vector<16x1xf32>
    %cst_34 = arith.constant 1.000000e+00 : f32
    %86 = vector.broadcast %cst_34 : f32 to vector<16x1xf32>
    %87 = arith.divf %86, %85 : vector<16x1xf32>
    %88 = vector.broadcast %87 : vector<16x1xf32> to vector<16x32xf32>
    %89 = arith.mulf %88, %9 : vector<16x32xf32>
    %cst_35 = arith.constant 1.000000e+00 : f32
    %90 = vector.broadcast %cst_35 : f32 to vector<16x1xf32>
    %91 = arith.subf %90, %87 : vector<16x1xf32>
    %92 = vector.broadcast %91 : vector<16x1xf32> to vector<16x32xf32>
    %93 = arith.mulf %92, %66 : vector<16x32xf32>
    %94 = arith.addf %89, %93 : vector<16x32xf32>
    %cst_36 = arith.constant dense<0.000000e+00> : vector<16xf32>
    %95 = vector.multi_reduction <add>, %94, %cst_36 [1] : vector<16x32xf32> to vector<16xf32>
    %96 = vector.shape_cast %95 : vector<16xf32> to vector<16x1xf32>
    %cst_37 = arith.constant 3.200000e+01 : f32
    %97 = vector.broadcast %cst_37 : f32 to vector<16x1xf32>
    %98 = arith.divf %96, %97 : vector<16x1xf32>
    %99 = vector.broadcast %98 : vector<16x1xf32> to vector<16x32xf32>
    %100 = arith.subf %94, %99 : vector<16x32xf32>
    %101 = arith.mulf %100, %100 : vector<16x32xf32>
    %cst_38 = arith.constant dense<0.000000e+00> : vector<16xf32>
    %102 = vector.multi_reduction <add>, %101, %cst_38 [1] : vector<16x32xf32> to vector<16xf32>
    %103 = vector.shape_cast %102 : vector<16xf32> to vector<16x1xf32>
    %cst_39 = arith.constant 3.200000e+01 : f32
    %104 = vector.broadcast %cst_39 : f32 to vector<16x1xf32>
    %105 = arith.divf %103, %104 : vector<16x1xf32>
    %106 = vector.broadcast %98 : vector<16x1xf32> to vector<16x32xf32>
    %107 = arith.subf %94, %106 : vector<16x32xf32>
    %cst_40 = arith.constant 9.99999974E-6 : f32
    %108 = vector.broadcast %cst_40 : f32 to vector<16x1xf32>
    %109 = arith.addf %105, %108 : vector<16x1xf32>
    %110 = math.rsqrt %109 : vector<16x1xf32>
    %111 = vector.broadcast %110 : vector<16x1xf32> to vector<16x32xf32>
    %112 = arith.mulf %107, %111 : vector<16x32xf32>
    %113 = vector.broadcast %12 : vector<1x32xf32> to vector<16x32xf32>
    %114 = arith.mulf %112, %113 : vector<16x32xf32>
    %115 = vector.broadcast %13 : vector<1x32xf32> to vector<16x32xf32>
    %116 = arith.addf %114, %115 : vector<16x32xf32>
    %cst_41 = arith.constant 0.000000e+00 : f32
    %117 = vector.broadcast %cst_41 : f32 to vector<16x32xf32>
    %118 = arith.maximumf %116, %117 : vector<16x32xf32>
    %cst_42 = arith.constant 0.000000e+00 : f32
    %119 = vector.broadcast %cst_42 : f32 to vector<16x96xf32>
    %120 = tpu.concatenate %118, %119 in 1 : vector<16x32xf32>, vector<16x96xf32> -> vector<16x128xf32>
    %c0_43 = arith.constant 0 : index
    %c0_44 = arith.constant 0 : index
    %121 = vector.load %arg8[%c0_43, %c0_44] : memref<16x128xf32, #tpu.memory_space<vmem>>, vector<16x128xf32>
    tpu.vector_store %arg8[%c0_43, %c0_44], %120 {strides = array<i32>} : memref<16x128xf32, #tpu.memory_space<vmem>>, vector<16x128xf32>,
    return
  }
  func.func @transform_0(%arg0: i32) -> (i32, i32) {
    %c0_i32 = arith.constant 0 : i32
    %c0_i32_0 = arith.constant 0 : i32
    %c0_i32_1 = arith.constant 0 : i32
    return %c0_i32, %c0_i32_0 : i32, i32
  }
  func.func @transform_1(%arg0: i32) -> (i32, i32) {
    %c0_i32 = arith.constant 0 : i32
    %c0_i32_0 = arith.constant 0 : i32
    %c0_i32_1 = arith.constant 0 : i32
    return %c0_i32, %c0_i32_0 : i32, i32
  }
  func.func @transform_2(%arg0: i32) -> (i32, i32) {
    %c0_i32 = arith.constant 0 : i32
    %c0_i32_0 = arith.constant 0 : i32
    %c0_i32_1 = arith.constant 0 : i32
    return %c0_i32, %c0_i32_0 : i32, i32
  }
  func.func @transform_3(%arg0: i32) -> (i32, i32) {
    %c0_i32 = arith.constant 0 : i32
    %c0_i32_0 = arith.constant 0 : i32
    %c0_i32_1 = arith.constant 0 : i32
    return %c0_i32, %c0_i32_0 : i32, i32
  }
  func.func @transform_4(%arg0: i32) -> (i32, i32) {
    %c0_i32 = arith.constant 0 : i32
    %c0_i32_0 = arith.constant 0 : i32
    %c0_i32_1 = arith.constant 0 : i32
    return %c0_i32, %c0_i32_0 : i32, i32
  }
  func.func @transform_5(%arg0: i32) -> (i32, i32) {
    %c0_i32 = arith.constant 0 : i32
    %c0_i32_0 = arith.constant 0 : i32
    %c0_i32_1 = arith.constant 0 : i32
    return %c0_i32, %c0_i32_0 : i32, i32
  }
  func.func @transform_6(%arg0: i32) -> (i32, i32) {
    %c0_i32 = arith.constant 0 : i32
    %c0_i32_0 = arith.constant 0 : i32
    %c0_i32_1 = arith.constant 0 : i32
    return %c0_i32, %c0_i32_0 : i32, i32
  }
  func.func @transform_7(%arg0: i32) -> (i32, i32) {
    %c0_i32 = arith.constant 0 : i32
    %c0_i32_0 = arith.constant 0 : i32
    %c0_i32_1 = arith.constant 0 : i32
    return %c0_i32, %c0_i32_0 : i32, i32
  }
}

</mosaic_0001>

<llo_original>
// kernel: tpu_custom_call.1
$region0: #{tpu_custom_call.1}
  #allocation0 [shape = 'u32[]', space=smem, size = 0x4, offset = 0x4, fixed_abs, tag = 'smem constant byte address 0x4 - core index']
  #allocation1 [shape = 'u32[144,128]{1,0:T(1,128)}', space=vmem, size = 0x12000, scoped, tag = 'internal scratch']
  %s0 = inlined_call_operand.hbm [shape: f32[16,16], index: 0, kind: input, shape index: {}]
  %s1 = inlined_call_operand.hbm [shape: f32[16,16], index: 1, kind: input, shape index: {}]
  %s2 = inlined_call_operand.hbm [shape: f32[16,128], index: 2, kind: input, shape index: {}]
  %s3 = inlined_call_operand.vmem [shape: f32[1,128], index: 3, kind: input, shape index: {}]
  %s4 = inlined_call_operand.vmem [shape: f32[1,96], index: 4, kind: input, shape index: {}]
  %s5 = inlined_call_operand.vmem [shape: f32[1,32], index: 5, kind: input, shape index: {}]
  %s6 = inlined_call_operand.vmem [shape: f32[1,32], index: 6, kind: input, shape index: {}]
  %s7 = inlined_call_operand.hbm [shape: f32[16,128], index: 7, kind: output, shape index: {}]
  %s8 = sld [smem:[#allocation0]]
  $region50: #{tpu_custom_call.1} parent=0
    _
  %s10 = ssub.s32 1, %s8
  %s11 = scalar_select 0, %s10, %s8
  $region1: #{tpu_custom_call.1} parent=0
    #allocation2 [shape = 'u8[8192]{0}', space=vmem, size = 0x2000, scoped, tag = 'input window, operand 0, single buffered']
    #allocation3 [shape = 's32[1]{0}', space=sflag, size = 0x4, scoped, tag = 'scoped memory for tpu_custom_call.1']
    #allocation4 [shape = 's32[1]{0}', space=sflag, size = 0x4, scoped, tag = 'scoped memory for tpu_custom_call.1']
    #allocation5 [shape = 'u8[8192]{0}', space=vmem, size = 0x2000, scoped, tag = 'input window, operand 1, single buffered']
    #allocation6 [shape = 's32[1]{0}', space=sflag, size = 0x4, scoped, tag = 'scoped memory for tpu_custom_call.1']
    #allocation7 [shape = 'u8[8192]{0}', space=vmem, size = 0x2000, scoped, tag = 'input window, operand 2, single buffered']
    #allocation8 [shape = 'u8[8192]{0}', space=vmem, size = 0x2000, scoped, tag = 'output window, operand 0, single buffered']
    %12 = vsyncpa [#allocation3], 0
    %13 = vsyncpa [#allocation6], 0
    %14 = vsyncpa [#allocation4], 0
    // Predicated region
    $region2: #{tpu_custom_call.1} parent=1 // pred_check
      _
    $region3: #{tpu_custom_call.1} parent=1 // pred_check_branch
      %16 = sbr.rel (0) target = $region5
    $region4: #{tpu_custom_call.1} parent=1 // pred_region
      %s18 = ssub.s32 256, 256
      %19 = vsyncadd [#allocation3], %s18
      %s20 = sshll.u32 [#allocation2], 4
      %s21 = int_to_ptr.vmem [resolvable:$true] %s20
      %26 = dma.hbm_to_vmem [thread:$0]  %s0, 256, %s21, [#allocation3], 128, 128, 8
    $region5: #{tpu_custom_call.1} parent=1 // pred_fallthru
      _
    // Predicated region
    $region6: #{tpu_custom_call.1} parent=1 // pred_check
      _
    $region7: #{tpu_custom_call.1} parent=1 // pred_check_branch
      %28 = sbr.rel (0) target = $region9
    $region8: #{tpu_custom_call.1} parent=1 // pred_region
      %s30 = ssub.s32 256, 256
      %31 = vsyncadd [#allocation6], %s30
      %s32 = sshll.u32 [#allocation5], 4
      %s33 = int_to_ptr.vmem [resolvable:$true] %s32
      %38 = dma.hbm_to_vmem [thread:$0]  %s1, 256, %s33, [#allocation6], 128, 128, 8
    $region9: #{tpu_custom_call.1} parent=1 // pred_fallthru
      _
    // Predicated region
    $region10: #{tpu_custom_call.1} parent=1 // pred_check
      _
    $region11: #{tpu_custom_call.1} parent=1 // pred_check_branch
      %40 = sbr.rel (0) target = $region13
    $region12: #{tpu_custom_call.1} parent=1 // pred_region
      %s42 = ssub.s32 256, 256
      %43 = vsyncadd [#allocation6], %s42
      %s44 = sshll.u32 [#allocation7], 4
      %s45 = int_to_ptr.vmem [resolvable:$true] %s44
      %50 = dma.hbm_to_vmem [thread:$0]  %s2, 256, %s45, [#allocation6], 128, 128, 8
    $region13: #{tpu_custom_call.1} parent=1 // pred_fallthru
      _
    // Predicated region
    $region14: #{tpu_custom_call.1} parent=1 // pred_check
      _
    $region15: #{tpu_custom_call.1} parent=1 // pred_check_branch
      %52 = sbr.rel (0) target = $region17
    $region16: #{tpu_custom_call.1} parent=1 // pred_region
      _
    $region17: #{tpu_custom_call.1} parent=1 // pred_fallthru
      _
    // Predicated region
    $region18: #{tpu_custom_call.1} parent=1 // pred_check
      _
    $region19: #{tpu_custom_call.1} parent=1 // pred_check_branch
      %54 = sbr.rel (0) target = $region21
    $region20: #{tpu_custom_call.1} parent=1 // pred_region
      _
    $region21: #{tpu_custom_call.1} parent=1 // pred_fallthru
      _
    // Predicated region
    $region22: #{tpu_custom_call.1} parent=1 // pred_check
      _
    $region23: #{tpu_custom_call.1} parent=1 // pred_check_branch
      %56 = sbr.rel (0) target = $region25
    $region24: #{tpu_custom_call.1} parent=1 // pred_region
      _
    $region25: #{tpu_custom_call.1} parent=1 // pred_fallthru
      _
    // Predicated region
    $region26: #{tpu_custom_call.1} parent=1 // pred_check
      _
    $region27: #{tpu_custom_call.1} parent=1 // pred_check_branch
      %58 = sbr.rel (0) target = $region29
    $region28: #{tpu_custom_call.1} parent=1 // pred_region
      _
    $region29: #{tpu_custom_call.1} parent=1 // pred_fallthru
      _
    // Predicated region
    $region30: #{tpu_custom_call.1} parent=1 // pred_check
      _
    $region31: #{tpu_custom_call.1} parent=1 // pred_check_branch
      %60 = sbr.rel (0) target = $region33
    $region32: #{tpu_custom_call.1} parent=1 // pred_region
      %61 = dma.done [#allocation3], 256
    $region33: #{tpu_custom_call.1} parent=1 // pred_fallthru
      _
    // Predicated region
    $region34: #{tpu_custom_call.1} parent=1 // pred_check
      _
    $region35: #{tpu_custom_call.1} parent=1 // pred_check_branch
      %63 = sbr.rel (0) target = $region37
    $region36: #{tpu_custom_call.1} parent=1 // pred_region
      %64 = dma.done [#allocation6], 256
    $region37: #{tpu_custom_call.1} parent=1 // pred_fallthru
      _
    // Predicated region
    $region38: #{tpu_custom_call.1} parent=1 // pred_check
      _
    $region39: #{tpu_custom_call.1} parent=1 // pred_check_branch
      %66 = sbr.rel (0) target = $region41
    $region40: #{tpu_custom_call.1} parent=1 // pred_region
      %67 = dma.done [#allocation6], 256
    $region41: #{tpu_custom_call.1} parent=1 // pred_fallthru
      _
    %v68 = vld [vmem:[#allocation2] sm:$0xff]
    %v69 = vld [vmem:[#allocation2 + $0x8] sm:$0xff]
    %v70 = vld [vmem:[#allocation7] sm:$0xff]
    %v71 = vld [vmem:[#allocation7 + $0x8] sm:$0xff]
    %v72 = vld [vmem:[%s3] sm:$0x1]
    %v74 = vlaneseq
    %v75 = vshrl.u32 %v74, 7
    %v76 = vsub.s32 0, %v75
    %v77 = vrot.slane %v72, %v76
    %vm79 = vcmask 130048
    %v81 = vsel %vm79, %v68, 0
    %v84 = vsel %vm79, %v69, 0
    %86 = vmatprep.subr.mxu0 0.0
    %87 = vmatpush1.msra.mxu0 0.0
    %88 = vmatprep.subr.mxu0 0.0
    %89 = vmatpush1.msra.mxu0 0.0
    %90 = vmatprep.subr.mxu0 0.0
    %91 = vmatpush1.msra.mxu0 0.0
    %92 = vmatprep.subr.mxu0 0.0
    %93 = vmatpush1.msra.mxu0 0.0
    %94 = vmatprep.subr.mxu0 0.0
    %95 = vmatpush1.msra.mxu0 0.0
    %96 = vmatprep.subr.mxu0 0.0
    %97 = vmatpush1.msra.mxu0 0.0
    %98 = vmatprep.subr.mxu0 0.0
    %99 = vmatpush1.msra.mxu0 0.0
    %100 = vmatprep.subr.mxu0 0.0
    %101 = vmatpush1.msra.mxu0 0.0
    %102 = vmatprep.subr.mxu0 0.0
    %103 = vmatpush1.msra.mxu0 0.0
    %104 = vmatprep.subr.mxu0 0.0
    %105 = vmatpush1.msra.mxu0 0.0
    %106 = vmatprep.subr.mxu0 0.0
    %107 = vmatpush1.msra.mxu0 0.0
    %108 = vmatprep.subr.mxu0 0.0
    %109 = vmatpush1.msra.mxu0 0.0
    %110 = vmatprep.subr.mxu0 0.0
    %111 = vmatpush1.msra.mxu0 0.0
    %112 = vmatprep.subr.mxu0 0.0
    %113 = vmatpush1.msra.mxu0 0.0
    %114 = vmatprep.subr.mxu0 0.0
    %115 = vmatpush1.msra.mxu0 %v71
    %116 = vmatprep.subr.mxu0 0.0
    %117 = vmatpush1.msra.mxu0 %v70
    %118 = vmatprep.subr.mxu0 0.0
    %119 = vmatpush2.msra.mxu0 0.0
    %120 = vmatprep.subr.mxu0 0.0
    %121 = vmatpush2.msra.mxu0 0.0
    %122 = vmatprep.subr.mxu0 0.0
    %123 = vmatpush2.msra.mxu0 0.0
    %124 = vmatprep.subr.mxu0 0.0
    %125 = vmatpush2.msra.mxu0 0.0
    %126 = vmatprep.subr.mxu0 0.0
    %127 = vmatpush2.msra.mxu0 0.0
    %128 = vmatprep.subr.mxu0 0.0
    %129 = vmatpush2.msra.mxu0 0.0
    %130 = vmatprep.subr.mxu0 0.0
    %131 = vmatpush2.msra.mxu0 0.0
    %132 = vmatprep.subr.mxu0 0.0
    %133 = vmatpush2.msra.mxu0 0.0
    %134 = vmatprep.subr.mxu0 0.0
    %135 = vmatpush2.msra.mxu0 0.0
    %136 = vmatprep.subr.mxu0 0.0
    %137 = vmatpush2.msra.mxu0 0.0
    %138 = vmatprep.subr.mxu0 0.0
    %139 = vmatpush2.msra.mxu0 0.0
    %140 = vmatprep.subr.mxu0 0.0
    %141 = vmatpush2.msra.mxu0 0.0
    %142 = vmatprep.subr.mxu0 0.0
    %143 = vmatpush2.msra.mxu0 0.0
    %144 = vmatprep.subr.mxu0 0.0
    %145 = vmatpush2.msra.mxu0 0.0
    %146 = vmatprep.subr.mxu0 0.0
    %147 = vmatpush2.msra.mxu0 0.0
    %148 = vmatprep.subr.mxu0 0.0
    %149 = vmatpush2.msra.mxu0 0.0
    %150 = vmatprep.mubr.f32.mxu0 0.0
    %151 = vmatmul.mubr.f32.gmra.mxu0 %v81
    %v152 = vpop.f32.mrf.mxu0
    %v153 = vadd.f32 %v77, %v152
    %v154 = vpop.f32.mrf.mxu0
    %155 = vmatprep.mubr.f32.mxu0 0.0
    %156 = vmatmul.mubr.f32.gmra.mxu0 %v84
    %v157 = vpop.f32.mrf.mxu0
    %v158 = vadd.f32 %v77, %v157
    %v159 = vpop.f32.mrf.mxu0
    %160 = vdwg.mxu0
    %v161 = vld [vmem:[#allocation5] sm:$0xff]
    %v162 = vld [vmem:[#allocation5 + $0x8] sm:$0xff]
    %v163 = vld [vmem:[%s4] sm:$0x1]
    %v164 = vld [vmem:[%s5] sm:$0x1]
    %v165 = vld [vmem:[%s6] sm:$0x1]
    %168 = vrot.lane.b32.xlu0 %v153, 96
    %v169 = vpop.permute.xlu0 %168
    %170 = vrot.lane.b32.xlu0 %v158, 96
    %v171 = vpop.permute.xlu0 %170
    %v172 = vsel %vm79, %v153, 0
    %v174 = vsel %vm79, %v158, 0
    %v176 = vsel %vm79, %v169, 0
    %v178 = vsel %vm79, %v171, 0
    %180 = vmatprep.subr.mxu0 0.0
    %181 = vmatpush1.xpose.msra.mxu0 0.0
    %182 = vmatprep.subr.mxu0 0.0
    %183 = vmatpush1.xpose.msra.mxu0 0.0
    %184 = vmatprep.subr.mxu0 0.0
    %185 = vmatpush1.xpose.msra.mxu0 0.0
    %186 = vmatprep.subr.mxu0 0.0
    %187 = vmatpush1.xpose.msra.mxu0 0.0
    %188 = vmatprep.subr.mxu0 0.0
    %189 = vmatpush1.xpose.msra.mxu0 0.0
    %190 = vmatprep.subr.mxu0 0.0
    %191 = vmatpush1.xpose.msra.mxu0 0.0
    %192 = vmatprep.subr.mxu0 0.0
    %193 = vmatpush1.xpose.msra.mxu0 0.0
    %194 = vmatprep.subr.mxu0 0.0
    %195 = vmatpush1.xpose.msra.mxu0 0.0
    %196 = vmatprep.subr.mxu0 0.0
    %197 = vmatpush1.xpose.msra.mxu0 0.0
    %198 = vmatprep.subr.mxu0 0.0
    %199 = vmatpush1.xpose.msra.mxu0 0.0
    %200 = vmatprep.subr.mxu0 0.0
    %201 = vmatpush1.xpose.msra.mxu0 0.0
    %202 = vmatprep.subr.mxu0 0.0
    %203 = vmatpush1.xpose.msra.mxu0 0.0
    %204 = vmatprep.subr.mxu0 0.0
    %205 = vmatpush1.xpose.msra.mxu0 0.0
    %206 = vmatprep.subr.mxu0 0.0
    %207 = vmatpush1.xpose.msra.mxu0 0.0
    %208 = vmatprep.subr.mxu0 0.0
    %209 = vmatpush1.xpose.msra.mxu0 %v178
    %210 = vmatprep.subr.mxu0 0.0
    %211 = vmatpush1.xpose.msra.mxu0 %v176
    %212 = vmatprep.subr.mxu0 0.0
    %213 = vmatpush2.xpose.msra.mxu0 0.0
    %214 = vmatprep.subr.mxu0 0.0
    %215 = vmatpush2.xpose.msra.mxu0 0.0
    %216 = vmatprep.subr.mxu0 0.0
    %217 = vmatpush2.xpose.msra.mxu0 0.0
    %218 = vmatprep.subr.mxu0 0.0
    %219 = vmatpush2.xpose.msra.mxu0 0.0
    %220 = vmatprep.subr.mxu0 0.0
    %221 = vmatpush2.xpose.msra.mxu0 0.0
    %222 = vmatprep.subr.mxu0 0.0
    %223 = vmatpush2.xpose.msra.mxu0 0.0
    %224 = vmatprep.subr.mxu0 0.0
    %225 = vmatpush2.xpose.msra.mxu0 0.0
    %226 = vmatprep.subr.mxu0 0.0
    %227 = vmatpush2.xpose.msra.mxu0 0.0
    %228 = vmatprep.subr.mxu0 0.0
    %229 = vmatpush2.xpose.msra.mxu0 0.0
    %230 = vmatprep.subr.mxu0 0.0
    %231 = vmatpush2.xpose.msra.mxu0 0.0
    %232 = vmatprep.subr.mxu0 0.0
    %233 = vmatpush2.xpose.msra.mxu0 0.0
    %234 = vmatprep.subr.mxu0 0.0
    %235 = vmatpush2.xpose.msra.mxu0 0.0
    %236 = vmatprep.subr.mxu0 0.0
    %237 = vmatpush2.xpose.msra.mxu0 0.0
    %238 = vmatprep.subr.mxu0 0.0
    %239 = vmatpush2.xpose.msra.mxu0 0.0
    %240 = vmatprep.subr.mxu0 0.0
    %241 = vmatpush2.xpose.msra.mxu0 0.0
    %242 = vmatprep.subr.mxu0 0.0
    %243 = vmatpush2.xpose.msra.mxu0 0.0
    %244 = vmatprep.mubr.f32.mxu0 0.0
    %245 = vmatmul.mubr.f32.gmra.mxu0 %v172
    %v246 = vpop.f32.mrf.mxu0
    %v247 = vadd.f32 0.0, %v246
    %v248 = vpop.f32.mrf.mxu0
    %249 = vmatprep.mubr.f32.mxu0 0.0
    %250 = vmatmul.mubr.f32.gmra.mxu0 %v174
    %v251 = vpop.f32.mrf.mxu0
    %v252 = vadd.f32 0.0, %v251
    %v253 = vpop.f32.mrf.mxu0
    %254 = vdwg.mxu0
    %v255 = vmul.f32 %v247, 0.25
    %v256 = vmul.f32 %v252, 0.25
    %vm257 = vcmp.gt.f32.partialorder %v161, 0.0
    %vm258 = vcmp.gt.f32.partialorder %v162, 0.0
    %v259 = vsel %vm257, %v255, -1e+30
    %v260 = vsel %vm258, %v256, -1e+30
    %v261 = vsel %vm79, %v259, -inf
    %262 = vmax.xlane.f32.xlu0 %v261
    %v263 = vpop.xlane.xlu0 %262
    %v264 = vsel %vm79, %v260, -inf
    %265 = vmax.xlane.f32.xlu0 %v264
    %v266 = vpop.xlane.xlu0 %265
    %v267 = vsub.f32 %v259, %v263
    %v268 = vsub.f32 %v260, %v266
    %v269 = vmul.f32 %v267, 1.442695
    %v270 = vpow.pop %v269
    %v271 = vmul.f32 %v268, 1.442695
    %v272 = vpow.pop %v271
    %v273 = vmul.f32 %v270, %v161
    %v274 = vmul.f32 %v272, %v162
    %v275 = vsel %vm79, %v273, 0.0
    %276 = vadd.xlane.f32.xlu0 %v275
    %v277 = vpop.xlane.xlu0 %276
    %v278 = vsel %vm79, %v274, 0.0
    %279 = vadd.xlane.f32.xlu0 %v278
    %v280 = vpop.xlane.xlu0 %279
    %vm281 = vcmp.gt.f32.partialorder %v277, 0.0
    %vm282 = vcmp.gt.f32.partialorder %v280, 0.0
    %v283 = vsel %vm281, %v277, 1.0
    %v284 = vsel %vm282, %v280, 1.0
    %v285 = vrcp.pop %v283
    %v286 = vrcp.pop %v284
    %v287 = vmul.f32 %v273, %v285
    %v288 = vmul.f32 %v274, %v286
    %289 = vrot.lane.b32.xlu0 %v153, 64
    %v290 = vpop.permute.xlu0 %289
    %291 = vrot.lane.b32.xlu0 %v158, 64
    %v292 = vpop.permute.xlu0 %291
    %v296 = vsel %vm79, %v287, 0
    %v299 = vsel %vm79, %v288, 0
    %301 = vmatprep.subr.mxu0 0.0
    %302 = vmatpush1.msra.mxu0 0.0
    %303 = vmatprep.subr.mxu0 0.0
    %304 = vmatpush1.msra.mxu0 0.0
    %305 = vmatprep.subr.mxu0 0.0
    %306 = vmatpush1.msra.mxu0 0.0
    %307 = vmatprep.subr.mxu0 0.0
    %308 = vmatpush1.msra.mxu0 0.0
    %309 = vmatprep.subr.mxu0 0.0
    %310 = vmatpush1.msra.mxu0 0.0
    %311 = vmatprep.subr.mxu0 0.0
    %312 = vmatpush1.msra.mxu0 0.0
    %313 = vmatprep.subr.mxu0 0.0
    %314 = vmatpush1.msra.mxu0 0.0
    %315 = vmatprep.subr.mxu0 0.0
    %316 = vmatpush1.msra.mxu0 0.0
    %317 = vmatprep.subr.mxu0 0.0
    %318 = vmatpush1.msra.mxu0 0.0
    %319 = vmatprep.subr.mxu0 0.0
    %320 = vmatpush1.msra.mxu0 0.0
    %321 = vmatprep.subr.mxu0 0.0
    %322 = vmatpush1.msra.mxu0 0.0
    %323 = vmatprep.subr.mxu0 0.0
    %324 = vmatpush1.msra.mxu0 0.0
    %325 = vmatprep.subr.mxu0 0.0
    %326 = vmatpush1.msra.mxu0 0.0
    %327 = vmatprep.subr.mxu0 0.0
    %328 = vmatpush1.msra.mxu0 0.0
    %329 = vmatprep.subr.mxu0 0.0
    %330 = vmatpush1.msra.mxu0 %v292
    %331 = vmatprep.subr.mxu0 0.0
    %332 = vmatpush1.msra.mxu0 %v290
    %333 = vmatprep.subr.mxu0 0.0
    %334 = vmatpush2.msra.mxu0 0.0
    %335 = vmatprep.subr.mxu0 0.0
    %336 = vmatpush2.msra.mxu0 0.0
    %337 = vmatprep.subr.mxu0 0.0
    %338 = vmatpush2.msra.mxu0 0.0
    %339 = vmatprep.subr.mxu0 0.0
    %340 = vmatpush2.msra.mxu0 0.0
    %341 = vmatprep.subr.mxu0 0.0
    %342 = vmatpush2.msra.mxu0 0.0
    %343 = vmatprep.subr.mxu0 0.0
    %344 = vmatpush2.msra.mxu0 0.0
    %345 = vmatprep.subr.mxu0 0.0
    %346 = vmatpush2.msra.mxu0 0.0
    %347 = vmatprep.subr.mxu0 0.0
    %348 = vmatpush2.msra.mxu0 0.0
    %349 = vmatprep.subr.mxu0 0.0
    %350 = vmatpush2.msra.mxu0 0.0
    %351 = vmatprep.subr.mxu0 0.0
    %352 = vmatpush2.msra.mxu0 0.0
    %353 = vmatprep.subr.mxu0 0.0
    %354 = vmatpush2.msra.mxu0 0.0
    %355 = vmatprep.subr.mxu0 0.0
    %356 = vmatpush2.msra.mxu0 0.0
    %357 = vmatprep.subr.mxu0 0.0
    %358 = vmatpush2.msra.mxu0 0.0
    %359 = vmatprep.subr.mxu0 0.0
    %360 = vmatpush2.msra.mxu0 0.0
    %361 = vmatprep.subr.mxu0 0.0
    %362 = vmatpush2.msra.mxu0 0.0
    %363 = vmatprep.subr.mxu0 0.0
    %364 = vmatpush2.msra.mxu0 0.0
    %365 = vmatprep.mubr.f32.mxu0 0.0
    %366 = vmatmul.mubr.f32.gmra.mxu0 %v296
    %v367 = vpop.f32.mrf.mxu0
    %v368 = vadd.f32 0.0, %v367
    %v369 = vpop.f32.mrf.mxu0
    %370 = vmatprep.mubr.f32.mxu0 0.0
    %371 = vmatmul.mubr.f32.gmra.mxu0 %v299
    %v372 = vpop.f32.mrf.mxu0
    %v373 = vadd.f32 0.0, %v372
    %v374 = vpop.f32.mrf.mxu0
    %375 = vdwg.mxu0
    %376 = vrot.lane.b32.xlu0 %v153, 112
    %v377 = vpop.permute.xlu0 %376
    %378 = vrot.lane.b32.xlu0 %v158, 112
    %v379 = vpop.permute.xlu0 %378
    %380 = vrot.lane.b32.xlu0 %v153, 80
    %v381 = vpop.permute.xlu0 %380
    %382 = vrot.lane.b32.xlu0 %v158, 80
    %v383 = vpop.permute.xlu0 %382
    %v384 = vsel %vm79, %v377, 0
    %v386 = vsel %vm79, %v379, 0
    %v388 = vsel %vm79, %v381, 0
    %v390 = vsel %vm79, %v383, 0
    %392 = vmatprep.subr.mxu0 0.0
    %393 = vmatpush1.xpose.msra.mxu0 0.0
    %394 = vmatprep.subr.mxu0 0.0
    %395 = vmatpush1.xpose.msra.mxu0 0.0
    %396 = vmatprep.subr.mxu0 0.0
    %397 = vmatpush1.xpose.msra.mxu0 0.0
    %398 = vmatprep.subr.mxu0 0.0
    %399 = vmatpush1.xpose.msra.mxu0 0.0
    %400 = vmatprep.subr.mxu0 0.0
    %401 = vmatpush1.xpose.msra.mxu0 0.0
    %402 = vmatprep.subr.mxu0 0.0
    %403 = vmatpush1.xpose.msra.mxu0 0.0
    %404 = vmatprep.subr.mxu0 0.0
    %405 = vmatpush1.xpose.msra.mxu0 0.0
    %406 = vmatprep.subr.mxu0 0.0
    %407 = vmatpush1.xpose.msra.mxu0 0.0
    %408 = vmatprep.subr.mxu0 0.0
    %409 = vmatpush1.xpose.msra.mxu0 0.0
    %410 = vmatprep.subr.mxu0 0.0
    %411 = vmatpush1.xpose.msra.mxu0 0.0
    %412 = vmatprep.subr.mxu0 0.0
    %413 = vmatpush1.xpose.msra.mxu0 0.0
    %414 = vmatprep.subr.mxu0 0.0
    %415 = vmatpush1.xpose.msra.mxu0 0.0
    %416 = vmatprep.subr.mxu0 0.0
    %417 = vmatpush1.xpose.msra.mxu0 0.0
    %418 = vmatprep.subr.mxu0 0.0
    %419 = vmatpush1.xpose.msra.mxu0 0.0
    %420 = vmatprep.subr.mxu0 0.0
    %421 = vmatpush1.xpose.msra.mxu0 %v390
    %422 = vmatprep.subr.mxu0 0.0
    %423 = vmatpush1.xpose.msra.mxu0 %v388
    %424 = vmatprep.subr.mxu0 0.0
    %425 = vmatpush2.xpose.msra.mxu0 0.0
    %426 = vmatprep.subr.mxu0 0.0
    %427 = vmatpush2.xpose.msra.mxu0 0.0
    %428 = vmatprep.subr.mxu0 0.0
    %429 = vmatpush2.xpose.msra.mxu0 0.0
    %430 = vmatprep.subr.mxu0 0.0
    %431 = vmatpush2.xpose.msra.mxu0 0.0
    %432 = vmatprep.subr.mxu0 0.0
    %433 = vmatpush2.xpose.msra.mxu0 0.0
    %434 = vmatprep.subr.mxu0 0.0
    %435 = vmatpush2.xpose.msra.mxu0 0.0
    %436 = vmatprep.subr.mxu0 0.0
    %437 = vmatpush2.xpose.msra.mxu0 0.0
    %438 = vmatprep.subr.mxu0 0.0
    %439 = vmatpush2.xpose.msra.mxu0 0.0
    %440 = vmatprep.subr.mxu0 0.0
    %441 = vmatpush2.xpose.msra.mxu0 0.0
    %442 = vmatprep.subr.mxu0 0.0
    %443 = vmatpush2.xpose.msra.mxu0 0.0
    %444 = vmatprep.subr.mxu0 0.0
    %445 = vmatpush2.xpose.msra.mxu0 0.0
    %446 = vmatprep.subr.mxu0 0.0
    %447 = vmatpush2.xpose.msra.mxu0 0.0
    %448 = vmatprep.subr.mxu0 0.0
    %449 = vmatpush2.xpose.msra.mxu0 0.0
    %450 = vmatprep.subr.mxu0 0.0
    %451 = vmatpush2.xpose.msra.mxu0 0.0
    %452 = vmatprep.subr.mxu0 0.0
    %453 = vmatpush2.xpose.msra.mxu0 0.0
    %454 = vmatprep.subr.mxu0 0.0
    %455 = vmatpush2.xpose.msra.mxu0 0.0
    %456 = vmatprep.mubr.f32.mxu0 0.0
    %457 = vmatmul.mubr.f32.gmra.mxu0 %v384
    %v458 = vpop.f32.mrf.mxu0
    %v459 = vadd.f32 0.0, %v458
    %v460 = vpop.f32.mrf.mxu0
    %461 = vmatprep.mubr.f32.mxu0 0.0
    %462 = vmatmul.mubr.f32.gmra.mxu0 %v386
    %v463 = vpop.f32.mrf.mxu0
    %v464 = vadd.f32 0.0, %v463
    %v465 = vpop.f32.mrf.mxu0
    %466 = vdwg.mxu0
    %v467 = vmul.f32 %v459, 0.25
    %v468 = vmul.f32 %v464, 0.25
    %v469 = vsel %vm257, %v467, -1e+30
    %v470 = vsel %vm258, %v468, -1e+30
    %v471 = vsel %vm79, %v469, -inf
    %472 = vmax.xlane.f32.xlu0 %v471
    %v473 = vpop.xlane.xlu0 %472
    %v474 = vsel %vm79, %v470, -inf
    %475 = vmax.xlane.f32.xlu0 %v474
    %v476 = vpop.xlane.xlu0 %475
    %v477 = vsub.f32 %v469, %v473
    %v478 = vsub.f32 %v470, %v476
    %v479 = vmul.f32 %v477, 1.442695
    %v480 = vpow.pop %v479
    %v481 = vmul.f32 %v478, 1.442695
    %v482 = vpow.pop %v481
    %v483 = vmul.f32 %v480, %v161
    %v484 = vmul.f32 %v482, %v162
    %v485 = vsel %vm79, %v483, 0.0
    %486 = vadd.xlane.f32.xlu0 %v485
    %v487 = vpop.xlane.xlu0 %486
    %v488 = vsel %vm79, %v484, 0.0
    %489 = vadd.xlane.f32.xlu0 %v488
    %v490 = vpop.xlane.xlu0 %489
    %vm491 = vcmp.gt.f32.partialorder %v487, 0.0
    %vm492 = vcmp.gt.f32.partialorder %v490, 0.0
    %v493 = vsel %vm491, %v487, 1.0
    %v494 = vsel %vm492, %v490, 1.0
    %v495 = vrcp.pop %v493
    %v496 = vrcp.pop %v494
    %v497 = vmul.f32 %v483, %v495
    %v498 = vmul.f32 %v484, %v496
    %499 = vrot.lane.b32.xlu0 %v153, 48
    %v500 = vpop.permute.xlu0 %499
    %501 = vrot.lane.b32.xlu0 %v158, 48
    %v502 = vpop.permute.xlu0 %501
    %v506 = vsel %vm79, %v497, 0
    %v509 = vsel %vm79, %v498, 0
    %511 = vmatprep.subr.mxu0 0.0
    %512 = vmatpush1.msra.mxu0 0.0
    %513 = vmatprep.subr.mxu0 0.0
    %514 = vmatpush1.msra.mxu0 0.0
    %515 = vmatprep.subr.mxu0 0.0
    %516 = vmatpush1.msra.mxu0 0.0
    %517 = vmatprep.subr.mxu0 0.0
    %518 = vmatpush1.msra.mxu0 0.0
    %519 = vmatprep.subr.mxu0 0.0
    %520 = vmatpush1.msra.mxu0 0.0
    %521 = vmatprep.subr.mxu0 0.0
    %522 = vmatpush1.msra.mxu0 0.0
    %523 = vmatprep.subr.mxu0 0.0
    %524 = vmatpush1.msra.mxu0 0.0
    %525 = vmatprep.subr.mxu0 0.0
    %526 = vmatpush1.msra.mxu0 0.0
    %527 = vmatprep.subr.mxu0 0.0
    %528 = vmatpush1.msra.mxu0 0.0
    %529 = vmatprep.subr.mxu0 0.0
    %530 = vmatpush1.msra.mxu0 0.0
    %531 = vmatprep.subr.mxu0 0.0
    %532 = vmatpush1.msra.mxu0 0.0
    %533 = vmatprep.subr.mxu0 0.0
    %534 = vmatpush1.msra.mxu0 0.0
    %535 = vmatprep.subr.mxu0 0.0
    %536 = vmatpush1.msra.mxu0 0.0
    %537 = vmatprep.subr.mxu0 0.0
    %538 = vmatpush1.msra.mxu0 0.0
    %539 = vmatprep.subr.mxu0 0.0
    %540 = vmatpush1.msra.mxu0 %v502
    %541 = vmatprep.subr.mxu0 0.0
    %542 = vmatpush1.msra.mxu0 %v500
    %543 = vmatprep.subr.mxu0 0.0
    %544 = vmatpush2.msra.mxu0 0.0
    %545 = vmatprep.subr.mxu0 0.0
    %546 = vmatpush2.msra.mxu0 0.0
    %547 = vmatprep.subr.mxu0 0.0
    %548 = vmatpush2.msra.mxu0 0.0
    %549 = vmatprep.subr.mxu0 0.0
    %550 = vmatpush2.msra.mxu0 0.0
    %551 = vmatprep.subr.mxu0 0.0
    %552 = vmatpush2.msra.mxu0 0.0
    %553 = vmatprep.subr.mxu0 0.0
    %554 = vmatpush2.msra.mxu0 0.0
    %555 = vmatprep.subr.mxu0 0.0
    %556 = vmatpush2.msra.mxu0 0.0
    %557 = vmatprep.subr.mxu0 0.0
    %558 = vmatpush2.msra.mxu0 0.0
    %559 = vmatprep.subr.mxu0 0.0
    %560 = vmatpush2.msra.mxu0 0.0
    %561 = vmatprep.subr.mxu0 0.0
    %562 = vmatpush2.msra.mxu0 0.0
    %563 = vmatprep.subr.mxu0 0.0
    %564 = vmatpush2.msra.mxu0 0.0
    %565 = vmatprep.subr.mxu0 0.0
    %566 = vmatpush2.msra.mxu0 0.0
    %567 = vmatprep.subr.mxu0 0.0
    %568 = vmatpush2.msra.mxu0 0.0
    %569 = vmatprep.subr.mxu0 0.0
    %570 = vmatpush2.msra.mxu0 0.0
    %571 = vmatprep.subr.mxu0 0.0
    %572 = vmatpush2.msra.mxu0 0.0
    %573 = vmatprep.subr.mxu0 0.0
    %574 = vmatpush2.msra.mxu0 0.0
    %575 = vmatprep.mubr.f32.mxu0 0.0
    %576 = vmatmul.mubr.f32.gmra.mxu0 %v506
    %v577 = vpop.f32.mrf.mxu0
    %v578 = vadd.f32 0.0, %v577
    %v579 = vpop.f32.mrf.mxu0
    %580 = vmatprep.mubr.f32.mxu0 0.0
    %581 = vmatmul.mubr.f32.gmra.mxu0 %v509
    %v582 = vpop.f32.mrf.mxu0
    %v583 = vadd.f32 0.0, %v582
    %v584 = vpop.f32.mrf.mxu0
    %585 = vdwg.mxu0
    %588 = vrot.lane.b32.xlu0 %v578, 16
    %v589 = vpop.permute.xlu0 %588
    %590 = vrot.lane.b32.xlu0 %v583, 16
    %v591 = vpop.permute.xlu0 %590
    %v594 = vsel %vm79, %v368, %v589
    %v595 = vsel %vm79, %v373, %v591
    %596 = vrot.lane.b32.xlu0 %v153, 32
    %v597 = vpop.permute.xlu0 %596
    %598 = vrot.lane.b32.xlu0 %v158, 32
    %v599 = vpop.permute.xlu0 %598
    %v602 = vsub.f32 %v594, %v597
    %v603 = vsub.f32 %v595, %v599
    %v605 = vlaneseq
    %v606 = vshrl.u32 %v605, 7
    %v607 = vsub.s32 0, %v606
    %v608 = vrot.slane %v163, %v607
    %v610 = vmul.f32 %v594, %v608
    %v611 = vmul.f32 %v595, %v608
    %612 = vrot.lane.b32.xlu0 %v608, 64
    %v613 = vpop.permute.xlu0 %612
    %v615 = vmul.f32 %v153, %v613
    %v616 = vmul.f32 %v158, %v613
    %619 = vrot.lane.b32.xlu0 %v615, 32
    %v620 = vpop.permute.xlu0 %619
    %621 = vrot.lane.b32.xlu0 %v616, 32
    %v622 = vpop.permute.xlu0 %621
    %v625 = vadd.f32 %v610, %v620
    %v626 = vadd.f32 %v611, %v622
    %v627 = vmul.f32 %v602, %v613
    %v628 = vmul.f32 %v603, %v613
    %v629 = vadd.f32 %v625, %v627
    %v630 = vadd.f32 %v626, %v628
    %vm631 = vcmask 261120
    %v632 = vsel %vm631, %v629, 0.0
    %633 = vadd.xlane.f32.xlu0 %v632
    %v634 = vpop.xlane.xlu0 %633
    %v635 = vsel %vm631, %v630, 0.0
    %636 = vadd.xlane.f32.xlu0 %v635
    %v637 = vpop.xlane.xlu0 %636
    %v638 = vsub.f32 0.0, %v634
    %v639 = vsub.f32 0.0, %v637
    %v640 = vmul.f32 %v638, 1.442695
    %v641 = vpow.pop %v640
    %v642 = vmul.f32 %v639, 1.442695
    %v643 = vpow.pop %v642
    %v644 = vadd.f32 %v641, 1.0
    %v645 = vadd.f32 %v643, 1.0
    %v646 = vrcp.pop %v644
    %v647 = vmul.f32 1.0, %v646
    %v648 = vrcp.pop %v645
    %v649 = vmul.f32 1.0, %v648
    %v650 = vmul.f32 %v647, %v153
    %v651 = vmul.f32 %v649, %v158
    %v652 = vsub.f32 1.0, %v647
    %v653 = vsub.f32 1.0, %v649
    %v654 = vmul.f32 %v652, %v594
    %v655 = vmul.f32 %v653, %v595
    %658 = vrot.lane.b32.xlu0 %v654, 96
    %v659 = vpop.permute.xlu0 %658
    %660 = vrot.lane.b32.xlu0 %v655, 96
    %v661 = vpop.permute.xlu0 %660
    %v664 = vadd.f32 %v650, %v659
    %v665 = vadd.f32 %v651, %v661
    %668 = vrot.lane.b32.xlu0 %v664, 32
    %v669 = vpop.permute.xlu0 %668
    %670 = vrot.lane.b32.xlu0 %v665, 32
    %v671 = vpop.permute.xlu0 %670
    %v674 = vsel %vm631, %v669, 0.0
    %675 = vadd.xlane.f32.xlu0 %v674
    %v676 = vpop.xlane.xlu0 %675
    %v677 = vsel %vm631, %v671, 0.0
    %678 = vadd.xlane.f32.xlu0 %v677
    %v679 = vpop.xlane.xlu0 %678
    %v680 = vrcp.pop 32.0
    %v681 = vmul.f32 %v676, %v680
    %v682 = vmul.f32 %v679, %v680
    %v683 = vsub.f32 %v664, %v681
    %v684 = vsub.f32 %v665, %v682
    %v685 = vmul.f32 %v683, %v683
    %v686 = vmul.f32 %v684, %v684
    %689 = vrot.lane.b32.xlu0 %v685, 32
    %v690 = vpop.permute.xlu0 %689
    %691 = vrot.lane.b32.xlu0 %v686, 32
    %v692 = vpop.permute.xlu0 %691
    %v695 = vsel %vm631, %v690, 0.0
    %696 = vadd.xlane.f32.xlu0 %v695
    %v697 = vpop.xlane.xlu0 %696
    %v698 = vsel %vm631, %v692, 0.0
    %699 = vadd.xlane.f32.xlu0 %v698
    %v700 = vpop.xlane.xlu0 %699
    %v701 = vmul.f32 %v697, %v680
    %v702 = vmul.f32 %v700, %v680
    %v703 = vadd.f32 %v701, 1e-05
    %v704 = vadd.f32 %v702, 1e-05
    %v705 = vrsqrt.pop %v703
    %v706 = vrsqrt.pop %v704
    %v707 = vmul.f32 %v683, %v705
    %v708 = vmul.f32 %v684, %v706
    %v710 = vlaneseq
    %v711 = vshrl.u32 %v710, 7
    %v712 = vsub.s32 0, %v711
    %v713 = vrot.slane %v164, %v712
    %714 = vrot.lane.b32.xlu0 %v713, 96
    %v715 = vpop.permute.xlu0 %714
    %v717 = vmul.f32 %v707, %v715
    %v718 = vmul.f32 %v708, %v715
    %v720 = vlaneseq
    %v721 = vshrl.u32 %v720, 7
    %v722 = vsub.s32 0, %v721
    %v723 = vrot.slane %v165, %v722
    %724 = vrot.lane.b32.xlu0 %v723, 96
    %v725 = vpop.permute.xlu0 %724
    %v727 = vadd.f32 %v717, %v725
    %v728 = vadd.f32 %v718, %v725
    %v729 = vmax.f32 %v727, 0.0
    %v730 = vmax.f32 %v728, 0.0
    %733 = vrot.lane.b32.xlu0 %v729, 32
    %v734 = vpop.permute.xlu0 %733
    %735 = vrot.lane.b32.xlu0 %v730, 32
    %v736 = vpop.permute.xlu0 %735
    %v739 = vsel %vm631, %v734, 0.0
    %v740 = vsel %vm631, %v736, 0.0
    %741 = vst [vmem:[#allocation8] sm:$0xff] %v739
    %742 = vst [vmem:[#allocation8 + $0x8] sm:$0xff] %v740
    // Predicated region
    $region42: #{tpu_custom_call.1} parent=1 // pred_check
      _
    $region43: #{tpu_custom_call.1} parent=1 // pred_check_branch
      %744 = sbr.rel (0) target = $region45
    $region44: #{tpu_custom_call.1} parent=1 // pred_region
      %s746 = ssub.s32 256, 256
      %747 = vsyncadd [#allocation4], %s746
      %s748 = sshll.u32 [#allocation8], 4
      %s749 = int_to_ptr.vmem [resolvable:$true] %s748
      %754 = dma.vmem_to_hbm [thread:$0]  %s749, 256, %s7, [#allocation4], 128, 128, 8
    $region45: #{tpu_custom_call.1} parent=1 // pred_fallthru
      _
    // Predicated region
    $region46: #{tpu_custom_call.1} parent=1 // pred_check
      _
    $region47: #{tpu_custom_call.1} parent=1 // pred_check_branch
      %756 = sbr.rel (0) target = $region49
    $region48: #{tpu_custom_call.1} parent=1 // pred_region
      %757 = dma.done [#allocation4], 256
    $region49: #{tpu_custom_call.1} parent=1 // pred_fallthru
      _
    %758 = vsyncpa [#allocation3], 1
    %759 = vsyncpa [#allocation6], 1
    %760 = vsyncpa [#allocation4], 1

</llo_original>
